<compile_context>
chip_gen: v5e
topology: v5e:2x2
jax: 0.10.0
libtpu: 0.0.40
codegen_flags: <defaults>
</compile_context>

<pallas_src>
import math

import jax
import jax.numpy as jnp
from jax import lax
from jax.experimental import pallas as pl
from jax.experimental.pallas import tpu as pltpu

DEFAULT_DROPOUT_RATE = 0.1  # identity at inference / eval
LANE = 128
SUB = 8


def _rnd(x, m):
    return ((x + m - 1) // m) * m


def _vmem_spec():
    return pl.BlockSpec(memory_space=pltpu.MemorySpace.VMEM)


# ---------------- host-side parameter packing (done once) ----------------
def pack_params(params, input_dim, hidden_dims, num_horizons, num_heads=4):
    """Pre-fold and pre-pack every weight/bias into ONE lane-padded f32 slab.

    Returns (slab, layout): `layout` holds static row offsets consumed by the kernel
    factory, so every in-kernel slice is a static view of the single slab ref.
    """
    E = hidden_dims[-1]
    H = num_horizons
    use_attention = H > 1
    head_dim = E // num_heads
    PAD_N = _rnd(max([LANE, 3 * E + 5 * H] + list(hidden_dims)), LANE)

    # ---- fold attention out_proj into the uncertainty head (exact linear composition) ----
    # attended = ctx @ Wo + bo ; unc_pre = attended @ Wu + bu = ctx @ (Wo@Wu) + (bo@Wu + bu)
    if use_attention:
        w_unc_folded = params["attn_w_out"] @ params["wu"]                  # [E, H]
        b_unc_folded = params["attn_b_out"] @ params["wu"] + params["bu"]   # [1, H]
        # fuse heads matmul + attention in-proj into one feature-consuming matmul
        w_big = jnp.concatenate([params["attn_w_in"], params["w_heads"]], axis=1)
        b_big = jnp.concatenate([params["attn_b_in"], params["b_heads"]], axis=1)
    else:
        w_big, b_big = params["w_heads"], params["b_heads"]

    rows = []
    off = 0
    layout = {"PAD_N": PAD_N, "use_attention": use_attention, "E": E, "H": H,
              "num_heads": num_heads, "head_dim": head_dim}

    def add_weight(w, k_rows):
        nonlocal off
        blk = jnp.zeros((k_rows, PAD_N), jnp.float32)
        blk = blk.at[: w.shape[0], : w.shape[1]].set(w.astype(jnp.float32))
        rows.append(blk)
        this = off
        off += k_rows
        return this

    def add_bias(b):
        nonlocal off
        blk = jnp.zeros((SUB, PAD_N), jnp.float32)  # 8-row-aligned block per bias row
        blk = blk.at[0, : b.shape[-1]].set(b.reshape(-1).astype(jnp.float32))
        rows.append(blk)
        this = off
        off += SUB
        return this

    # feature-extractor weights (layer 0 keeps K = padded input_dim; later layers use
    # the full PAD_N-wide hidden state, whose extra columns are exactly zero)
    k0 = _rnd(input_dim, SUB)
    fe = []
    prev_rows = k0
    for li, w in enumerate(params["fe_w"]):
        fe.append({"w_off": add_weight(w, prev_rows), "k_rows": prev_rows})
        prev_rows = PAD_N
    layout["big_w_off"] = add_weight(w_big, PAD_N)
    if use_attention:
        layout["unc_w_off"] = add_weight(w_unc_folded, _rnd(E, SUB))
    for li, b in enumerate(params["fe_b"]):
        fe[li]["b_row"] = add_bias(b)
    layout["fe"] = fe
    layout["big_b_row"] = add_bias(b_big)
    if use_attention:
        layout["unc_b_row"] = add_bias(b_unc_folded)
    layout["k0"] = k0

    slab = jnp.concatenate(rows, axis=0)
    layout["slab_rows"] = slab.shape[0]
    return slab, layout


# ---------------- single fused forward kernel ----------------
def _make_fused_kernel(layout, B, out_pad):
    PAD_N = layout["PAD_N"]
    E, H = layout["E"], layout["H"]
    num_heads, head_dim = layout["num_heads"], layout["head_dim"]
    use_attention = layout["use_attention"]
    fe = layout["fe"]
    big_w_off, big_b_row = layout["big_w_off"], layout["big_b_row"]
    if use_attention:
        unc_w_off, unc_b_row = layout["unc_w_off"], layout["unc_b_row"]
    heads_col = 3 * E if use_attention else 0
    scale = 1.0 / math.sqrt(head_dim)
    inv_heads = 1.0 / num_heads

    def kernel(x_ref, slab_ref, out_ref):
        # ----- feature extractor: (Linear -> ReLU -> Dropout[=identity]) * L -----
        h = x_ref[...]
        for seg in fe:
            w = slab_ref[seg["w_off"]:seg["w_off"] + seg["k_rows"], :]
            b = slab_ref[seg["b_row"]:seg["b_row"] + 1, :]
            h = jnp.maximum(jnp.dot(h, w, preferred_element_type=jnp.float32) + b, 0.0)
        # h: [B, PAD_N]; real features live in cols [0, E), the rest are exactly 0.

        # ----- one fused feature-consuming matmul: [in-proj q|k|v (3E) | heads (5H)] -----
        w_big = slab_ref[big_w_off:big_w_off + PAD_N, :]
        b_big = slab_ref[big_b_row:big_b_row + 1, :]
        big = jnp.dot(h, w_big, preferred_element_type=jnp.float32) + b_big  # [B, PAD_N]

        # ----- prediction heads: price | sigmoid(vol) | softmax(direction) -----
        price = big[:, heads_col:heads_col + H]
        vol = jax.nn.sigmoid(big[:, heads_col + H:heads_col + 2 * H])
        l0 = big[:, heads_col + 2 * H:heads_col + 3 * H]
        l1 = big[:, heads_col + 3 * H:heads_col + 4 * H]
        l2 = big[:, heads_col + 4 * H:heads_col + 5 * H]
        m = jnp.maximum(jnp.maximum(l0, l1), l2)
        e0, e1, e2 = jnp.exp(l0 - m), jnp.exp(l1 - m), jnp.exp(l2 - m)
        den = e0 + e1 + e2  # exact division for parity with torch softmax
        pieces = [price, vol, e0 / den, e1 / den, e2 / den]

        if use_attention:
            # q/k/v identical for every horizon (stacked features are a broadcast):
            # attention body runs exactly once on [B, E]; out_proj is folded into the
            # uncertainty head, accumulated in vregs (no VMEM scratch, no [E,E] matmul).
            w_acc = jnp.zeros((B, B), jnp.float32)
            unc_acc = jnp.zeros((B, PAD_N), jnp.float32)
            for hh in range(num_heads):
                lo = hh * head_dim
                q_h = big[:, lo:lo + head_dim]
                k_h = big[:, E + lo:E + lo + head_dim]
                v_h = big[:, 2 * E + lo:2 * E + lo + head_dim]
                # contract q dim-1 with k dim-1 directly (no explicit transpose / XLU work)
                s = lax.dot_general(q_h, k_h, (((1,), (1,)), ((), ())),
                                    preferred_element_type=jnp.float32) * scale
                s = s - jnp.max(s, axis=-1, keepdims=True)
                e = jnp.exp(s)
                p = e / jnp.sum(e, axis=-1, keepdims=True)
                ctx = jnp.dot(p, v_h, preferred_element_type=jnp.float32)     # [B, hd]
                w_unc_h = slab_ref[unc_w_off + lo:unc_w_off + lo + head_dim, :]
                unc_acc = unc_acc + jnp.dot(ctx, w_unc_h,
                                            preferred_element_type=jnp.float32)
                w_acc = w_acc + p
            b_unc = slab_ref[unc_b_row:unc_b_row + 1, :]
            pieces.append(jax.nn.sigmoid((unc_acc + b_unc)[:, 0:H]))   # uncertainty [B,H]
            pieces.append(w_acc * inv_heads)                           # attn weights [B,B]

        packed = jnp.concatenate(pieces, axis=1)
        pad = out_pad - packed.shape[1]
        if pad > 0:
            packed = jnp.concatenate([packed, jnp.zeros((B, pad), jnp.float32)], axis=1)
        out_ref[...] = packed  # single lane-dense [B, out_pad] store / one writeback DMA

    return kernel


# ---------------- forward pass (mirrors PredictionNetwork.forward) ----------------
def prediction_network_forward(x, slab, layout, horizons):
    B = x.shape[0]
    H = len(horizons)
    assert H == layout["H"]
    use_attention = layout["use_attention"]
    k0 = layout["k0"]
    if x.shape[1] != k0:  # pad input features to a sublane-aligned K
        x = jnp.pad(x, ((0, 0), (0, k0 - x.shape[1])))

    n_cols = 5 * H + ((H + B) if use_attention else 0)
    out_pad = _rnd(max(n_cols, LANE), LANE)

    out = pl.pallas_call(
        _make_fused_kernel(layout, B, out_pad),
        out_shape=jax.ShapeDtypeStruct((B, out_pad), jnp.float32),
        in_specs=[_vmem_spec(), _vmem_spec()],
        out_specs=_vmem_spec(),
    )(x, slab)

    price = out[:, 0:H]
    vol = out[:, H:2 * H]
    dirs = out[:, 2 * H:5 * H].reshape(B, 3, H)  # [batch, class, horizon]
    predictions = {}
    for i, horizon in enumerate(horizons):
        predictions[f"horizon_{horizon}"] = {
            "price": price[:, i:i + 1],
            "volatility": vol[:, i:i + 1],
            "direction": dirs[:, :, i],
        }
    if use_attention:
        predictions["uncertainty"] = out[:, 5 * H:6 * H]
        attnw = out[:, 6 * H:6 * H + B]
        # identical across horizons (broadcast stacked features) -> (N=H, L=B, S=B)
        predictions["attention_weights"] = jnp.broadcast_to(attnw[None], (H, B, B))
    return predictions


# ---------------- pure-JAX reference of the PyTorch forward (for checking) ----------------
def reference_forward(x, params, horizons, num_heads=4):
    h = x
    for w, b in zip(params["fe_w"], params["fe_b"]):
        h = jnp.maximum(h @ w + b, 0.0)
    features = h
    H = len(horizons)
    E = features.shape[1]
    B = x.shape[0]
    hm = features @ params["w_heads"] + params["b_heads"]
    price = hm[:, :H]
    vol = jax.nn.sigmoid(hm[:, H:2 * H])
    dirs = jax.nn.softmax(hm[:, 2 * H:5 * H].reshape(B, 3, H), axis=1)
    preds = {}
    for i, hz in enumerate(horizons):
        preds[f"horizon_{hz}"] = {"price": price[:, i:i + 1],
                                  "volatility": vol[:, i:i + 1],
                                  "direction": dirs[:, :, i]}
    if H > 1:
        head_dim = E // num_heads
        qkv = features @ params["attn_w_in"] + params["attn_b_in"]
        q, k, v = qkv[:, :E], qkv[:, E:2 * E], qkv[:, 2 * E:]
        ctxs, w_acc = [], 0.0
        for hh in range(num_heads):
            lo, hi = hh * head_dim, (hh + 1) * head_dim
            s = (q[:, lo:hi] @ k[:, lo:hi].T) / math.sqrt(head_dim)
            p = jax.nn.softmax(s, axis=-1)
            ctxs.append(p @ v[:, lo:hi])
            w_acc = w_acc + p
        ctx = jnp.concatenate(ctxs, axis=1)
        attended = ctx @ params["attn_w_out"] + params["attn_b_out"]
        preds["uncertainty"] = jax.nn.sigmoid(attended @ params["wu"] + params["bu"])
        preds["attention_weights"] = jnp.broadcast_to((w_acc / num_heads)[None], (H, B, B))
    return preds


# ---------------- deterministic synthetic parameter init ----------------
def init_params(key, input_dim, hidden_dims, num_horizons):
    keys = jax.random.split(key, 16)
    ki = 0

    def nxt(shape, scale=0.1):
        nonlocal ki
        out = scale * jax.random.normal(keys[ki], shape, jnp.float32)
        ki += 1
        return out

    params = {}
    fe_w, fe_b = [], []
    prev = input_dim
    for hdim in hidden_dims:
        fe_w.append(nxt((prev, hdim)))
        fe_b.append(nxt((1, hdim), 0.05))
        prev = hdim
    E = hidden_dims[-1]
    params["fe_w"], params["fe_b"] = fe_w, fe_b
    # per-horizon heads packed [price(H) | vol(H) | dir0(H) | dir1(H) | dir2(H)]
    params["w_heads"] = nxt((E, 5 * num_horizons))
    params["b_heads"] = nxt((1, 5 * num_horizons), 0.05)
    # nn.MultiheadAttention(embed_dim=E, num_heads=4): in_proj [E,3E], out_proj [E,E]
    params["attn_w_in"] = nxt((E, 3 * E))
    params["attn_b_in"] = nxt((1, 3 * E), 0.05)
    params["attn_w_out"] = nxt((E, E))
    params["attn_b_out"] = nxt((1, E), 0.05)
    # uncertainty_head: Linear(E, num_horizons)
    params["wu"] = nxt((E, num_horizons))
    params["bu"] = nxt((1, num_horizons), 0.05)
    return params


if __name__ == "__main__":
    BATCH = 8
    INPUT_DIM = 16
    HIDDEN_DIMS = [32, 32]          # E = 32, divisible by num_heads=4
    HORIZONS = [1, 5, 10]

    key = jax.random.PRNGKey(0)
    pkey, xkey = jax.random.split(key)
    params = init_params(pkey, INPUT_DIM, HIDDEN_DIMS, len(HORIZONS))
    x = jax.random.normal(xkey, (BATCH, INPUT_DIM), jnp.float32)

    slab, layout = pack_params(params, INPUT_DIM, HIDDEN_DIMS, len(HORIZONS))
    preds = prediction_network_forward(x, slab, layout, HORIZONS)
    jax.block_until_ready(jax.tree_util.tree_leaves(preds))

    # shape / probability sanity checks
    assert preds["horizon_1"]["price"].shape == (BATCH, 1)
    assert preds["horizon_5"]["volatility"].shape == (BATCH, 1)
    assert preds["horizon_5"]["direction"].shape == (BATCH, 3)
    assert preds["uncertainty"].shape == (BATCH, len(HORIZONS))
    assert preds["attention_weights"].shape == (len(HORIZONS), BATCH, BATCH)
    dsum = preds["horizon_10"]["direction"].sum(axis=-1)
    assert bool(jnp.all(jnp.abs(dsum - 1.0) < 1e-3))

    # numerical parity vs a pure-JAX reference of the PyTorch forward
    ref = reference_forward(x, params, HORIZONS)
    for got, want in zip(jax.tree_util.tree_leaves(preds), jax.tree_util.tree_leaves(ref)):
        assert got.shape == want.shape
        assert bool(jnp.allclose(got, want, atol=1e-3, rtol=1e-3))

    print("KERNEL_OK")
</pallas_src>

<mosaic_0001>
module attributes {stable_mosaic.version = 11 : i64} {
  func.func @kernel(%arg0: memref<8x16xf32, #tpu.memory_space<vmem>>, %arg1: memref<336x128xf32, #tpu.memory_space<vmem>>, %arg2: memref<8x128xf32, #tpu.memory_space<vmem>>) attributes {dimension_semantics = [], scalar_prefetch = 0 : i64, scratch_operands = 0 : i64, tpu.core_type = #tpu.core_type<tc>} {
    %c0 = arith.constant 0 : index
    %c0_0 = arith.constant 0 : index
    %0 = vector.load %arg0[%c0, %c0_0] : memref<8x16xf32, #tpu.memory_space<vmem>>, vector<8x16xf32>
    %c0_1 = arith.constant 0 : index
    %c0_2 = arith.constant 0 : index
    %1 = vector.load %arg1[%c0_1, %c0_2] : memref<336x128xf32, #tpu.memory_space<vmem>>, vector<16x128xf32>
    %c304 = arith.constant 304 : index
    %c0_3 = arith.constant 0 : index
    %2 = vector.load %arg1[%c304, %c0_3] : memref<336x128xf32, #tpu.memory_space<vmem>>, vector<1x128xf32>
    %cst = arith.constant dense<0.000000e+00> : vector<8x128xf32>
    %3 = tpu.matmul %0, %1, %cst {dimension_numbers = #tpu.dot_dimension_numbers<[1], [0], [0], [1], [0, 0, 1, 1], [], []>} : vector<8x16xf32>, vector<16x128xf32>, vector<8x128xf32> -> vector<8x128xf32>
    %4 = vector.broadcast %2 : vector<1x128xf32> to vector<8x128xf32>
    %5 = arith.addf %3, %4 : vector<8x128xf32>
    %cst_4 = arith.constant 0.000000e+00 : f32
    %6 = vector.broadcast %cst_4 : f32 to vector<8x128xf32>
    %7 = arith.maximumf %5, %6 : vector<8x128xf32>
    %c16 = arith.constant 16 : index
    %c0_5 = arith.constant 0 : index
    %8 = vector.load %arg1[%c16, %c0_5] : memref<336x128xf32, #tpu.memory_space<vmem>>, vector<128x128xf32>
    %c312 = arith.constant 312 : index
    %c0_6 = arith.constant 0 : index
    %9 = vector.load %arg1[%c312, %c0_6] : memref<336x128xf32, #tpu.memory_space<vmem>>, vector<1x128xf32>
    %cst_7 = arith.constant dense<0.000000e+00> : vector<8x128xf32>
    %10 = tpu.matmul %7, %8, %cst_7 {dimension_numbers = #tpu.dot_dimension_numbers<[1], [0], [0], [1], [0, 0, 1, 1], [], []>} : vector<8x128xf32>, vector<128x128xf32>, vector<8x128xf32> -> vector<8x128xf32>
    %11 = vector.broadcast %9 : vector<1x128xf32> to vector<8x128xf32>
    %12 = arith.addf %10, %11 : vector<8x128xf32>
    %cst_8 = arith.constant 0.000000e+00 : f32
    %13 = vector.broadcast %cst_8 : f32 to vector<8x128xf32>
    %14 = arith.maximumf %12, %13 : vector<8x128xf32>
    %c144 = arith.constant 144 : index
    %c0_9 = arith.constant 0 : index
    %15 = vector.load %arg1[%c144, %c0_9] : memref<336x128xf32, #tpu.memory_space<vmem>>, vector<128x128xf32>
    %c320 = arith.constant 320 : index
    %c0_10 = arith.constant 0 : index
    %16 = vector.load %arg1[%c320, %c0_10] : memref<336x128xf32, #tpu.memory_space<vmem>>, vector<1x128xf32>
    %cst_11 = arith.constant dense<0.000000e+00> : vector<8x128xf32>
    %17 = tpu.matmul %14, %15, %cst_11 {dimension_numbers = #tpu.dot_dimension_numbers<[1], [0], [0], [1], [0, 0, 1, 1], [], []>} : vector<8x128xf32>, vector<128x128xf32>, vector<8x128xf32> -> vector<8x128xf32>
    %18 = vector.broadcast %16 : vector<1x128xf32> to vector<8x128xf32>
    %19 = arith.addf %17, %18 : vector<8x128xf32>
    %20 = vector.extract_strided_slice %19 {offsets = [0, 96], sizes = [8, 3], strides = [1, 1]} : vector<8x128xf32> to vector<8x3xf32>
    %21 = vector.extract_strided_slice %19 {offsets = [0, 99], sizes = [8, 3], strides = [1, 1]} : vector<8x128xf32> to vector<8x3xf32>
    %22 = arith.negf %21 : vector<8x3xf32>
    %23 = math.exp %22 : vector<8x3xf32>
    %cst_12 = arith.constant 1.000000e+00 : f32
    %24 = vector.broadcast %cst_12 : f32 to vector<8x3xf32>
    %25 = arith.addf %24, %23 : vector<8x3xf32>
    %26 = arith.divf %24, %25 : vector<8x3xf32>
    %27 = vector.extract_strided_slice %19 {offsets = [0, 102], sizes = [8, 3], strides = [1, 1]} : vector<8x128xf32> to vector<8x3xf32>
    %28 = vector.extract_strided_slice %19 {offsets = [0, 105], sizes = [8, 3], strides = [1, 1]} : vector<8x128xf32> to vector<8x3xf32>
    %29 = vector.extract_strided_slice %19 {offsets = [0, 108], sizes = [8, 3], strides = [1, 1]} : vector<8x128xf32> to vector<8x3xf32>
    %30 = arith.maximumf %27, %28 : vector<8x3xf32>
    %31 = arith.maximumf %30, %29 : vector<8x3xf32>
    %32 = arith.subf %27, %31 : vector<8x3xf32>
    %33 = math.exp %32 : vector<8x3xf32>
    %34 = arith.subf %28, %31 : vector<8x3xf32>
    %35 = math.exp %34 : vector<8x3xf32>
    %36 = arith.subf %29, %31 : vector<8x3xf32>
    %37 = math.exp %36 : vector<8x3xf32>
    %38 = arith.addf %33, %35 : vector<8x3xf32>
    %39 = arith.addf %38, %37 : vector<8x3xf32>
    %40 = arith.divf %33, %39 : vector<8x3xf32>
    %41 = arith.divf %35, %39 : vector<8x3xf32>
    %42 = arith.divf %37, %39 : vector<8x3xf32>
    %cst_13 = arith.constant 0.000000e+00 : f32
    %43 = vector.broadcast %cst_13 : f32 to vector<8x8xf32>
    %cst_14 = arith.constant 0.000000e+00 : f32
    %44 = vector.broadcast %cst_14 : f32 to vector<8x128xf32>
    %45 = vector.extract_strided_slice %19 {offsets = [0, 0], sizes = [8, 8], strides = [1, 1]} : vector<8x128xf32> to vector<8x8xf32>
    %46 = vector.extract_strided_slice %19 {offsets = [0, 32], sizes = [8, 8], strides = [1, 1]} : vector<8x128xf32> to vector<8x8xf32>
    %47 = vector.extract_strided_slice %19 {offsets = [0, 64], sizes = [8, 8], strides = [1, 1]} : vector<8x128xf32> to vector<8x8xf32>
    %cst_15 = arith.constant dense<0.000000e+00> : vector<8x8xf32>
    %48 = tpu.matmul %45, %46, %cst_15 {dimension_numbers = #tpu.dot_dimension_numbers<[1], [1], [0], [0], [0, 0, 1, 0], [], []>} : vector<8x8xf32>, vector<8x8xf32>, vector<8x8xf32> -> vector<8x8xf32>
    %cst_16 = arith.constant 0.353553385 : f32
    %49 = vector.broadcast %cst_16 : f32 to vector<8x8xf32>
    %50 = arith.mulf %48, %49 : vector<8x8xf32>
    %cst_17 = arith.constant dense<0xFF800000> : vector<8xf32>
    %51 = vector.multi_reduction <maximumf>, %50, %cst_17 [1] : vector<8x8xf32> to vector<8xf32>
    %52 = vector.shape_cast %51 : vector<8xf32> to vector<8x1xf32>
    %53 = vector.broadcast %52 : vector<8x1xf32> to vector<8x8xf32>
    %54 = arith.subf %50, %53 : vector<8x8xf32>
    %55 = math.exp %54 : vector<8x8xf32>
    %cst_18 = arith.constant dense<0.000000e+00> : vector<8xf32>
    %56 = vector.multi_reduction <add>, %55, %cst_18 [1] : vector<8x8xf32> to vector<8xf32>
    %57 = vector.shape_cast %56 : vector<8xf32> to vector<8x1xf32>
    %58 = vector.broadcast %57 : vector<8x1xf32> to vector<8x8xf32>
    %59 = arith.divf %55, %58 : vector<8x8xf32>
    %cst_19 = arith.constant dense<0.000000e+00> : vector<8x8xf32>
    %60 = tpu.matmul %59, %47, %cst_19 {dimension_numbers = #tpu.dot_dimension_numbers<[1], [0], [0], [1], [0, 0, 1, 1], [], []>} : vector<8x8xf32>, vector<8x8xf32>, vector<8x8xf32> -> vector<8x8xf32>
    %c272 = arith.constant 272 : index
    %c0_20 = arith.constant 0 : index
    %61 = vector.load %arg1[%c272, %c0_20] : memref<336x128xf32, #tpu.memory_space<vmem>>, vector<8x128xf32>
    %cst_21 = arith.constant dense<0.000000e+00> : vector<8x128xf32>
    %62 = tpu.matmul %60, %61, %cst_21 {dimension_numbers = #tpu.dot_dimension_numbers<[1], [0], [0], [1], [0, 0, 1, 1], [], []>} : vector<8x8xf32>, vector<8x128xf32>, vector<8x128xf32> -> vector<8x128xf32>
    %63 = arith.addf %44, %62 : vector<8x128xf32>
    %64 = arith.addf %43, %59 : vector<8x8xf32>
    %65 = vector.extract_strided_slice %19 {offsets = [0, 8], sizes = [8, 8], strides = [1, 1]} : vector<8x128xf32> to vector<8x8xf32>
    %66 = vector.extract_strided_slice %19 {offsets = [0, 40], sizes = [8, 8], strides = [1, 1]} : vector<8x128xf32> to vector<8x8xf32>
    %67 = vector.extract_strided_slice %19 {offsets = [0, 72], sizes = [8, 8], strides = [1, 1]} : vector<8x128xf32> to vector<8x8xf32>
    %cst_22 = arith.constant dense<0.000000e+00> : vector<8x8xf32>
    %68 = tpu.matmul %65, %66, %cst_22 {dimension_numbers = #tpu.dot_dimension_numbers<[1], [1], [0], [0], [0, 0, 1, 0], [], []>} : vector<8x8xf32>, vector<8x8xf32>, vector<8x8xf32> -> vector<8x8xf32>
    %cst_23 = arith.constant 0.353553385 : f32
    %69 = vector.broadcast %cst_23 : f32 to vector<8x8xf32>
    %70 = arith.mulf %68, %69 : vector<8x8xf32>
    %cst_24 = arith.constant dense<0xFF800000> : vector<8xf32>
    %71 = vector.multi_reduction <maximumf>, %70, %cst_24 [1] : vector<8x8xf32> to vector<8xf32>
    %72 = vector.shape_cast %71 : vector<8xf32> to vector<8x1xf32>
    %73 = vector.broadcast %72 : vector<8x1xf32> to vector<8x8xf32>
    %74 = arith.subf %70, %73 : vector<8x8xf32>
    %75 = math.exp %74 : vector<8x8xf32>
    %cst_25 = arith.constant dense<0.000000e+00> : vector<8xf32>
    %76 = vector.multi_reduction <add>, %75, %cst_25 [1] : vector<8x8xf32> to vector<8xf32>
    %77 = vector.shape_cast %76 : vector<8xf32> to vector<8x1xf32>
    %78 = vector.broadcast %77 : vector<8x1xf32> to vector<8x8xf32>
    %79 = arith.divf %75, %78 : vector<8x8xf32>
    %cst_26 = arith.constant dense<0.000000e+00> : vector<8x8xf32>
    %80 = tpu.matmul %79, %67, %cst_26 {dimension_numbers = #tpu.dot_dimension_numbers<[1], [0], [0], [1], [0, 0, 1, 1], [], []>} : vector<8x8xf32>, vector<8x8xf32>, vector<8x8xf32> -> vector<8x8xf32>
    %c280 = arith.constant 280 : index
    %c0_27 = arith.constant 0 : index
    %81 = vector.load %arg1[%c280, %c0_27] : memref<336x128xf32, #tpu.memory_space<vmem>>, vector<8x128xf32>
    %cst_28 = arith.constant dense<0.000000e+00> : vector<8x128xf32>
    %82 = tpu.matmul %80, %81, %cst_28 {dimension_numbers = #tpu.dot_dimension_numbers<[1], [0], [0], [1], [0, 0, 1, 1], [], []>} : vector<8x8xf32>, vector<8x128xf32>, vector<8x128xf32> -> vector<8x128xf32>
    %83 = arith.addf %63, %82 : vector<8x128xf32>
    %84 = arith.addf %64, %79 : vector<8x8xf32>
    %85 = vector.extract_strided_slice %19 {offsets = [0, 16], sizes = [8, 8], strides = [1, 1]} : vector<8x128xf32> to vector<8x8xf32>
    %86 = vector.extract_strided_slice %19 {offsets = [0, 48], sizes = [8, 8], strides = [1, 1]} : vector<8x128xf32> to vector<8x8xf32>
    %87 = vector.extract_strided_slice %19 {offsets = [0, 80], sizes = [8, 8], strides = [1, 1]} : vector<8x128xf32> to vector<8x8xf32>
    %cst_29 = arith.constant dense<0.000000e+00> : vector<8x8xf32>
    %88 = tpu.matmul %85, %86, %cst_29 {dimension_numbers = #tpu.dot_dimension_numbers<[1], [1], [0], [0], [0, 0, 1, 0], [], []>} : vector<8x8xf32>, vector<8x8xf32>, vector<8x8xf32> -> vector<8x8xf32>
    %cst_30 = arith.constant 0.353553385 : f32
    %89 = vector.broadcast %cst_30 : f32 to vector<8x8xf32>
    %90 = arith.mulf %88, %89 : vector<8x8xf32>
    %cst_31 = arith.constant dense<0xFF800000> : vector<8xf32>
    %91 = vector.multi_reduction <maximumf>, %90, %cst_31 [1] : vector<8x8xf32> to vector<8xf32>
    %92 = vector.shape_cast %91 : vector<8xf32> to vector<8x1xf32>
    %93 = vector.broadcast %92 : vector<8x1xf32> to vector<8x8xf32>
    %94 = arith.subf %90, %93 : vector<8x8xf32>
    %95 = math.exp %94 : vector<8x8xf32>
    %cst_32 = arith.constant dense<0.000000e+00> : vector<8xf32>
    %96 = vector.multi_reduction <add>, %95, %cst_32 [1] : vector<8x8xf32> to vector<8xf32>
    %97 = vector.shape_cast %96 : vector<8xf32> to vector<8x1xf32>
    %98 = vector.broadcast %97 : vector<8x1xf32> to vector<8x8xf32>
    %99 = arith.divf %95, %98 : vector<8x8xf32>
    %cst_33 = arith.constant dense<0.000000e+00> : vector<8x8xf32>
    %100 = tpu.matmul %99, %87, %cst_33 {dimension_numbers = #tpu.dot_dimension_numbers<[1], [0], [0], [1], [0, 0, 1, 1], [], []>} : vector<8x8xf32>, vector<8x8xf32>, vector<8x8xf32> -> vector<8x8xf32>
    %c288 = arith.constant 288 : index
    %c0_34 = arith.constant 0 : index
    %101 = vector.load %arg1[%c288, %c0_34] : memref<336x128xf32, #tpu.memory_space<vmem>>, vector<8x128xf32>
    %cst_35 = arith.constant dense<0.000000e+00> : vector<8x128xf32>
    %102 = tpu.matmul %100, %101, %cst_35 {dimension_numbers = #tpu.dot_dimension_numbers<[1], [0], [0], [1], [0, 0, 1, 1], [], []>} : vector<8x8xf32>, vector<8x128xf32>, vector<8x128xf32> -> vector<8x128xf32>
    %103 = arith.addf %83, %102 : vector<8x128xf32>
    %104 = arith.addf %84, %99 : vector<8x8xf32>
    %105 = vector.extract_strided_slice %19 {offsets = [0, 24], sizes = [8, 8], strides = [1, 1]} : vector<8x128xf32> to vector<8x8xf32>
    %106 = vector.extract_strided_slice %19 {offsets = [0, 56], sizes = [8, 8], strides = [1, 1]} : vector<8x128xf32> to vector<8x8xf32>
    %107 = vector.extract_strided_slice %19 {offsets = [0, 88], sizes = [8, 8], strides = [1, 1]} : vector<8x128xf32> to vector<8x8xf32>
    %cst_36 = arith.constant dense<0.000000e+00> : vector<8x8xf32>
    %108 = tpu.matmul %105, %106, %cst_36 {dimension_numbers = #tpu.dot_dimension_numbers<[1], [1], [0], [0], [0, 0, 1, 0], [], []>} : vector<8x8xf32>, vector<8x8xf32>, vector<8x8xf32> -> vector<8x8xf32>
    %cst_37 = arith.constant 0.353553385 : f32
    %109 = vector.broadcast %cst_37 : f32 to vector<8x8xf32>
    %110 = arith.mulf %108, %109 : vector<8x8xf32>
    %cst_38 = arith.constant dense<0xFF800000> : vector<8xf32>
    %111 = vector.multi_reduction <maximumf>, %110, %cst_38 [1] : vector<8x8xf32> to vector<8xf32>
    %112 = vector.shape_cast %111 : vector<8xf32> to vector<8x1xf32>
    %113 = vector.broadcast %112 : vector<8x1xf32> to vector<8x8xf32>
    %114 = arith.subf %110, %113 : vector<8x8xf32>
    %115 = math.exp %114 : vector<8x8xf32>
    %cst_39 = arith.constant dense<0.000000e+00> : vector<8xf32>
    %116 = vector.multi_reduction <add>, %115, %cst_39 [1] : vector<8x8xf32> to vector<8xf32>
    %117 = vector.shape_cast %116 : vector<8xf32> to vector<8x1xf32>
    %118 = vector.broadcast %117 : vector<8x1xf32> to vector<8x8xf32>
    %119 = arith.divf %115, %118 : vector<8x8xf32>
    %cst_40 = arith.constant dense<0.000000e+00> : vector<8x8xf32>
    %120 = tpu.matmul %119, %107, %cst_40 {dimension_numbers = #tpu.dot_dimension_numbers<[1], [0], [0], [1], [0, 0, 1, 1], [], []>} : vector<8x8xf32>, vector<8x8xf32>, vector<8x8xf32> -> vector<8x8xf32>
    %c296 = arith.constant 296 : index
    %c0_41 = arith.constant 0 : index
    %121 = vector.load %arg1[%c296, %c0_41] : memref<336x128xf32, #tpu.memory_space<vmem>>, vector<8x128xf32>
    %cst_42 = arith.constant dense<0.000000e+00> : vector<8x128xf32>
    %122 = tpu.matmul %120, %121, %cst_42 {dimension_numbers = #tpu.dot_dimension_numbers<[1], [0], [0], [1], [0, 0, 1, 1], [], []>} : vector<8x8xf32>, vector<8x128xf32>, vector<8x128xf32> -> vector<8x128xf32>
    %123 = arith.addf %103, %122 : vector<8x128xf32>
    %124 = arith.addf %104, %119 : vector<8x8xf32>
    %c328 = arith.constant 328 : index
    %c0_43 = arith.constant 0 : index
    %125 = vector.load %arg1[%c328, %c0_43] : memref<336x128xf32, #tpu.memory_space<vmem>>, vector<1x128xf32>
    %126 = vector.broadcast %125 : vector<1x128xf32> to vector<8x128xf32>
    %127 = arith.addf %123, %126 : vector<8x128xf32>
    %128 = vector.extract_strided_slice %127 {offsets = [0, 0], sizes = [8, 3], strides = [1, 1]} : vector<8x128xf32> to vector<8x3xf32>
    %129 = arith.negf %128 : vector<8x3xf32>
    %130 = math.exp %129 : vector<8x3xf32>
    %cst_44 = arith.constant 1.000000e+00 : f32
    %131 = vector.broadcast %cst_44 : f32 to vector<8x3xf32>
    %132 = arith.addf %131, %130 : vector<8x3xf32>
    %133 = arith.divf %131, %132 : vector<8x3xf32>
    %cst_45 = arith.constant 2.500000e-01 : f32
    %134 = vector.broadcast %cst_45 : f32 to vector<8x8xf32>
    %135 = arith.mulf %124, %134 : vector<8x8xf32>
    %136 = tpu.concatenate %20, %26, %40, %41, %42, %133, %135 in 1 : vector<8x3xf32>, vector<8x3xf32>, vector<8x3xf32>, vector<8x3xf32>, vector<8x3xf32>, vector<8x3xf32>, vector<8x8xf32> -> vector<8x26xf32>
    %cst_46 = arith.constant 0.000000e+00 : f32
    %137 = vector.broadcast %cst_46 : f32 to vector<8x102xf32>
    %138 = tpu.concatenate %136, %137 in 1 : vector<8x26xf32>, vector<8x102xf32> -> vector<8x128xf32>
    %c0_47 = arith.constant 0 : index
    %c0_48 = arith.constant 0 : index
    %139 = vector.load %arg2[%c0_47, %c0_48] : memref<8x128xf32, #tpu.memory_space<vmem>>, vector<8x128xf32>
    tpu.vector_store %arg2[%c0_47, %c0_48], %138 {strides = array<i32>} : memref<8x128xf32, #tpu.memory_space<vmem>>, vector<8x128xf32>,
    return
  }
}

</mosaic_0001>

<llo_original>
// kernel: tpu_custom_call.1
$region0: #{tpu_custom_call.1}
  #allocation0 [shape = 'u32[]', space=smem, size = 0x4, offset = 0x4, fixed_abs, tag = 'smem constant byte address 0x4 - core index']
  #allocation1 [shape = 'u32[72,128]{1,0:T(1,128)}', space=vmem, size = 0x9000, scoped, tag = 'internal scratch']
  %s0 = inlined_call_operand.hbm [shape: f32[8,16], index: 0, kind: input, shape index: {}]
  %s1 = inlined_call_operand.hbm [shape: f32[336,128], index: 1, kind: input, shape index: {}]
  %s2 = inlined_call_operand.hbm [shape: f32[8,128], index: 2, kind: output, shape index: {}]
  %s3 = sld [smem:[#allocation0]]
  $region26: #{tpu_custom_call.1} parent=0
    _
  %s5 = ssub.s32 1, %s3
  %s6 = scalar_select 0, %s5, %s3
  $region1: #{tpu_custom_call.1} parent=0
    #allocation2 [shape = 'u8[4096]{0}', space=vmem, size = 0x1000, scoped, tag = 'input window, operand 0, single buffered']
    #allocation3 [shape = 's32[1]{0}', space=sflag, size = 0x4, scoped, tag = 'scoped memory for tpu_custom_call.1']
    #allocation4 [shape = 's32[1]{0}', space=sflag, size = 0x4, scoped, tag = 'scoped memory for tpu_custom_call.1']
    #allocation5 [shape = 'u8[172032]{0}', space=vmem, size = 0x2a000, scoped, tag = 'input window, operand 1, single buffered']
    #allocation6 [shape = 's32[1]{0}', space=sflag, size = 0x4, scoped, tag = 'scoped memory for tpu_custom_call.1']
    #allocation7 [shape = 'u8[4096]{0}', space=vmem, size = 0x1000, scoped, tag = 'output window, operand 0, single buffered']
    %7 = vsyncpa [#allocation3], 0
    %8 = vsyncpa [#allocation6], 0
    %9 = vsyncpa [#allocation4], 0
    // Predicated region
    $region2: #{tpu_custom_call.1} parent=1 // pred_check
      _
    $region3: #{tpu_custom_call.1} parent=1 // pred_check_branch
      %11 = sbr.rel (0) target = $region5
    $region4: #{tpu_custom_call.1} parent=1 // pred_region
      %13 = vsyncadd [#allocation3], 0
      %s15 = sshll.u32 %s0, 4
      %s16 = int_to_ptr.hbm [resolvable:$true] %s15
      %s17 = sshll.u32 [#allocation2], 4
      %s18 = int_to_ptr.vmem [resolvable:$true] %s17
      %20 = dma.hbm_to_vmem [thread:$0]  %s16, 128, %s18, [#allocation3]
    $region5: #{tpu_custom_call.1} parent=1 // pred_fallthru
      _
    // Predicated region
    $region6: #{tpu_custom_call.1} parent=1 // pred_check
      _
    $region7: #{tpu_custom_call.1} parent=1 // pred_check_branch
      %22 = sbr.rel (0) target = $region9
    $region8: #{tpu_custom_call.1} parent=1 // pred_region
      %24 = vsyncadd [#allocation6], 0
      %s25 = sshll.u32 %s1, 4
      %s26 = int_to_ptr.hbm [resolvable:$true] %s25
      %s27 = sshll.u32 [#allocation5], 4
      %s28 = int_to_ptr.vmem [resolvable:$true] %s27
      %33 = dma.hbm_to_vmem [thread:$0]  %s26, 5376, %s28, [#allocation6], 128, 128, 8
    $region9: #{tpu_custom_call.1} parent=1 // pred_fallthru
      _
    // Predicated region
    $region10: #{tpu_custom_call.1} parent=1 // pred_check
      _
    $region11: #{tpu_custom_call.1} parent=1 // pred_check_branch
      %35 = sbr.rel (0) target = $region13
    $region12: #{tpu_custom_call.1} parent=1 // pred_region
      %37 = dma.done [#allocation3], 128
    $region13: #{tpu_custom_call.1} parent=1 // pred_fallthru
      _
    // Predicated region
    $region14: #{tpu_custom_call.1} parent=1 // pred_check
      _
    $region15: #{tpu_custom_call.1} parent=1 // pred_check_branch
      %39 = sbr.rel (0) target = $region17
    $region16: #{tpu_custom_call.1} parent=1 // pred_region
      %41 = dma.done [#allocation6], 5376
    $region17: #{tpu_custom_call.1} parent=1 // pred_fallthru
      _
    %v42 = vld [vmem:[#allocation2] sm:$0xff]
    %v43 = vld [vmem:[#allocation5] sm:$0xff]
    %v44 = vld [vmem:[#allocation5 + $0x8] sm:$0xff]
    %v45 = vld [vmem:[#allocation5 + $0x130] sm:$0x1]
    %v46 = vperm.slane %v45, 0
    %vm47 = vcmask 130048
    %v49 = vsel %vm47, %v42, 0
    %51 = vmatpush.msra.mxu0 0.0
    %52 = vmatpush.msra.mxu0 0.0
    %53 = vmatpush.msra.mxu0 0.0
    %54 = vmatpush.msra.mxu0 0.0
    %55 = vmatpush.msra.mxu0 0.0
    %56 = vmatpush.msra.mxu0 0.0
    %57 = vmatpush.msra.mxu0 0.0
    %58 = vmatpush.msra.mxu0 0.0
    %59 = vmatpush.msra.mxu0 0.0
    %60 = vmatpush.msra.mxu0 0.0
    %61 = vmatpush.msra.mxu0 0.0
    %62 = vmatpush.msra.mxu0 0.0
    %63 = vmatpush.msra.mxu0 0.0
    %64 = vmatpush.msra.mxu0 0.0
    %65 = vmatpush.msra.mxu0 %v44
    %66 = vmatpush.msra.mxu0 %v43
    %67 = vmatmul.f32.gmra.mxu0 %v49
    %v68 = vpop.f32.mrf.mxu0
    %v69 = vadd.f32 %v46, %v68
    %70 = vdwg.mxu0
    %v71 = vmax.f32 %v69, 0.0
    %v72 = vld [vmem:[#allocation5 + $0x10] sm:$0xff]
    %v73 = vld [vmem:[#allocation5 + $0x18] sm:$0xff]
    %v74 = vld [vmem:[#allocation5 + $0x20] sm:$0xff]
    %v75 = vld [vmem:[#allocation5 + $0x28] sm:$0xff]
    %v76 = vld [vmem:[#allocation5 + $0x30] sm:$0xff]
    %v77 = vld [vmem:[#allocation5 + $0x38] sm:$0xff]
    %v78 = vld [vmem:[#allocation5 + $0x40] sm:$0xff]
    %v79 = vld [vmem:[#allocation5 + $0x48] sm:$0xff]
    %v80 = vld [vmem:[#allocation5 + $0x50] sm:$0xff]
    %v81 = vld [vmem:[#allocation5 + $0x58] sm:$0xff]
    %v82 = vld [vmem:[#allocation5 + $0x60] sm:$0xff]
    %v83 = vld [vmem:[#allocation5 + $0x68] sm:$0xff]
    %v84 = vld [vmem:[#allocation5 + $0x70] sm:$0xff]
    %v85 = vld [vmem:[#allocation5 + $0x78] sm:$0xff]
    %v86 = vld [vmem:[#allocation5 + $0x80] sm:$0xff]
    %v87 = vld [vmem:[#allocation5 + $0x88] sm:$0xff]
    %v88 = vld [vmem:[#allocation5 + $0x138] sm:$0x1]
    %v89 = vperm.slane %v88, 0
    %90 = vmatpush.msra.mxu0 %v87
    %91 = vmatpush.msra.mxu0 %v86
    %92 = vmatpush.msra.mxu0 %v85
    %93 = vmatpush.msra.mxu0 %v84
    %94 = vmatpush.msra.mxu0 %v83
    %95 = vmatpush.msra.mxu0 %v82
    %96 = vmatpush.msra.mxu0 %v81
    %97 = vmatpush.msra.mxu0 %v80
    %98 = vmatpush.msra.mxu0 %v79
    %99 = vmatpush.msra.mxu0 %v78
    %100 = vmatpush.msra.mxu0 %v77
    %101 = vmatpush.msra.mxu0 %v76
    %102 = vmatpush.msra.mxu0 %v75
    %103 = vmatpush.msra.mxu0 %v74
    %104 = vmatpush.msra.mxu0 %v73
    %105 = vmatpush.msra.mxu0 %v72
    %106 = vmatmul.f32.gmra.mxu0 %v71
    %v107 = vpop.f32.mrf.mxu0
    %v108 = vadd.f32 %v89, %v107
    %109 = vdwg.mxu0
    %v110 = vmax.f32 %v108, 0.0
    %v111 = vld [vmem:[#allocation5 + $0x90] sm:$0xff]
    %v112 = vld [vmem:[#allocation5 + $0x98] sm:$0xff]
    %v113 = vld [vmem:[#allocation5 + $0xa0] sm:$0xff]
    %v114 = vld [vmem:[#allocation5 + $0xa8] sm:$0xff]
    %v115 = vld [vmem:[#allocation5 + $0xb0] sm:$0xff]
    %v116 = vld [vmem:[#allocation5 + $0xb8] sm:$0xff]
    %v117 = vld [vmem:[#allocation5 + $0xc0] sm:$0xff]
    %v118 = vld [vmem:[#allocation5 + $0xc8] sm:$0xff]
    %v119 = vld [vmem:[#allocation5 + $0xd0] sm:$0xff]
    %v120 = vld [vmem:[#allocation5 + $0xd8] sm:$0xff]
    %v121 = vld [vmem:[#allocation5 + $0xe0] sm:$0xff]
    %v122 = vld [vmem:[#allocation5 + $0xe8] sm:$0xff]
    %v123 = vld [vmem:[#allocation5 + $0xf0] sm:$0xff]
    %v124 = vld [vmem:[#allocation5 + $0xf8] sm:$0xff]
    %v125 = vld [vmem:[#allocation5 + $0x100] sm:$0xff]
    %v126 = vld [vmem:[#allocation5 + $0x108] sm:$0xff]
    %v127 = vld [vmem:[#allocation5 + $0x140] sm:$0x1]
    %v128 = vperm.slane %v127, 0
    %129 = vmatpush.msra.mxu0 %v126
    %130 = vmatpush.msra.mxu0 %v125
    %131 = vmatpush.msra.mxu0 %v124
    %132 = vmatpush.msra.mxu0 %v123
    %133 = vmatpush.msra.mxu0 %v122
    %134 = vmatpush.msra.mxu0 %v121
    %135 = vmatpush.msra.mxu0 %v120
    %136 = vmatpush.msra.mxu0 %v119
    %137 = vmatpush.msra.mxu0 %v118
    %138 = vmatpush.msra.mxu0 %v117
    %139 = vmatpush.msra.mxu0 %v116
    %140 = vmatpush.msra.mxu0 %v115
    %141 = vmatpush.msra.mxu0 %v114
    %142 = vmatpush.msra.mxu0 %v113
    %143 = vmatpush.msra.mxu0 %v112
    %144 = vmatpush.msra.mxu0 %v111
    %145 = vmatmul.f32.gmra.mxu0 %v110
    %v146 = vpop.f32.mrf.mxu0
    %v147 = vadd.f32 %v128, %v146
    %148 = vdwg.mxu0
    %v149 = vxor.u32 %v147, 2147483648
    %v150 = vmul.f32 %v149, 1.442695
    %v151 = vpow.pop %v150
    %v152 = vadd.f32 %v151, 1.0
    %v153 = vrcp.pop %v152
    %v154 = vmul.f32 %v152, %v153
    %v155 = vsub.f32 1.0, %v154
    %v156 = vmul.f32 %v153, %v155
    %v157 = vadd.f32 %v153, %v156
    %vm158 = vweird.f32 %v152
    %vm159 = vweird.f32 %v153
    %vm160 = vmor %vm158, %vm159
    %v161 = vsel %vm160, %v153, %v157
    %v162 = vand.u32 2147483647, %v152
    %vm163 = vcmp.eq.f32.partialorder %v162, 8.507059e+37
    %v164 = vand.u32 %v152, 2147483648
    %v165 = vor.u32 1.1754944e-38, %v164
    %v166 = vsel %vm163, %v165, %v161
    %v167 = vmul.f32 1.0, %v166
    %169 = vrot.lane.b32.xlu0 %v147, 125
    %v170 = vpop.permute.xlu0 %169
    %v172 = vmax.f32 %v147, %v170
    %173 = vrot.lane.b32.xlu0 %v147, 122
    %v174 = vpop.permute.xlu0 %173
    %v176 = vmax.f32 %v172, %v174
    %v177 = vsub.f32 %v147, %v176
    %v178 = vmul.f32 %v177, 1.442695
    %v179 = vpow.pop %v178
    %181 = vrot.lane.b32.xlu0 %v176, 3
    %v182 = vpop.permute.xlu0 %181
    %v184 = vsub.f32 %v147, %v182
    %v185 = vmul.f32 %v184, 1.442695
    %v186 = vpow.pop %v185
    %187 = vrot.lane.b32.xlu0 %v176, 6
    %v188 = vpop.permute.xlu0 %187
    %v190 = vsub.f32 %v147, %v188
    %v191 = vmul.f32 %v190, 1.442695
    %v192 = vpow.pop %v191
    %194 = vrot.lane.b32.xlu0 %v186, 125
    %v195 = vpop.permute.xlu0 %194
    %v197 = vadd.f32 %v179, %v195
    %199 = vrot.lane.b32.xlu0 %v192, 122
    %v200 = vpop.permute.xlu0 %199
    %v202 = vadd.f32 %v197, %v200
    %v203 = vrcp.pop %v202
    %v204 = vmul.f32 %v202, %v203
    %v205 = vsub.f32 1.0, %v204
    %v206 = vmul.f32 %v203, %v205
    %v207 = vadd.f32 %v203, %v206
    %vm208 = vweird.f32 %v202
    %vm209 = vweird.f32 %v203
    %vm210 = vmor %vm208, %vm209
    %v211 = vsel %vm210, %v203, %v207
    %v212 = vand.u32 2147483647, %v202
    %vm213 = vcmp.eq.f32.partialorder %v212, 8.507059e+37
    %v214 = vand.u32 %v202, 2147483648
    %v215 = vor.u32 1.1754944e-38, %v214
    %v216 = vsel %vm213, %v215, %v211
    %v217 = vmul.f32 %v179, %v216
    %219 = vrot.lane.b32.xlu0 %v202, 3
    %v220 = vpop.permute.xlu0 %219
    %v222 = vrcp.pop %v220
    %v223 = vmul.f32 %v220, %v222
    %v224 = vsub.f32 1.0, %v223
    %v225 = vmul.f32 %v222, %v224
    %v226 = vadd.f32 %v222, %v225
    %vm227 = vweird.f32 %v220
    %vm228 = vweird.f32 %v222
    %vm229 = vmor %vm227, %vm228
    %v230 = vsel %vm229, %v222, %v226
    %v231 = vand.u32 2147483647, %v220
    %vm232 = vcmp.eq.f32.partialorder %v231, 8.507059e+37
    %v233 = vand.u32 %v220, 2147483648
    %v234 = vor.u32 1.1754944e-38, %v233
    %v235 = vsel %vm232, %v234, %v230
    %v236 = vmul.f32 %v186, %v235
    %237 = vrot.lane.b32.xlu0 %v202, 6
    %v238 = vpop.permute.xlu0 %237
    %v240 = vrcp.pop %v238
    %v241 = vmul.f32 %v238, %v240
    %v242 = vsub.f32 1.0, %v241
    %v243 = vmul.f32 %v240, %v242
    %v244 = vadd.f32 %v240, %v243
    %vm245 = vweird.f32 %v238
    %vm246 = vweird.f32 %v240
    %vm247 = vmor %vm245, %vm246
    %v248 = vsel %vm247, %v240, %v244
    %v249 = vand.u32 2147483647, %v238
    %vm250 = vcmp.eq.f32.partialorder %v249, 8.507059e+37
    %v251 = vand.u32 %v238, 2147483648
    %v252 = vor.u32 1.1754944e-38, %v251
    %v253 = vsel %vm250, %v252, %v248
    %v254 = vmul.f32 %v192, %v253
    %255 = vrot.lane.b32.xlu0 %v147, 96
    %v256 = vpop.permute.xlu0 %255
    %vm257 = vcmask 64512
    %v258 = vsel %vm257, %v147, 0
    %v260 = vsel %vm257, %v256, 0
    %262 = vmatpush.xpose.msra.mxu0 0.0
    %263 = vmatpush.xpose.msra.mxu0 0.0
    %264 = vmatpush.xpose.msra.mxu0 0.0
    %265 = vmatpush.xpose.msra.mxu0 0.0
    %266 = vmatpush.xpose.msra.mxu0 0.0
    %267 = vmatpush.xpose.msra.mxu0 0.0
    %268 = vmatpush.xpose.msra.mxu0 0.0
    %269 = vmatpush.xpose.msra.mxu0 0.0
    %270 = vmatpush.xpose.msra.mxu0 0.0
    %271 = vmatpush.xpose.msra.mxu0 0.0
    %272 = vmatpush.xpose.msra.mxu0 0.0
    %273 = vmatpush.xpose.msra.mxu0 0.0
    %274 = vmatpush.xpose.msra.mxu0 0.0
    %275 = vmatpush.xpose.msra.mxu0 0.0
    %276 = vmatpush.xpose.msra.mxu0 0.0
    %277 = vmatpush.xpose.msra.mxu0 %v260
    %278 = vmatmul.f32.gmra.mxu0 %v258
    %v279 = vpop.f32.mrf.mxu0
    %v280 = vadd.f32 0.0, %v279
    %281 = vdwg.mxu0
    %v282 = vmul.f32 %v280, 0.35355338
    %v283 = vsel %vm257, %v282, -inf
    %284 = vmax.xlane.f32.xlu0 %v283
    %v285 = vpop.xlane.xlu0 %284
    %v286 = vsub.f32 %v282, %v285
    %v287 = vmul.f32 %v286, 1.442695
    %v288 = vpow.pop %v287
    %v289 = vsel %vm257, %v288, 0.0
    %290 = vadd.xlane.f32.xlu0 %v289
    %v291 = vpop.xlane.xlu0 %290
    %v292 = vrcp.pop %v291
    %v293 = vmul.f32 %v291, %v292
    %v294 = vsub.f32 1.0, %v293
    %v295 = vmul.f32 %v292, %v294
    %v296 = vadd.f32 %v292, %v295
    %vm297 = vweird.f32 %v291
    %vm298 = vweird.f32 %v292
    %vm299 = vmor %vm297, %vm298
    %v300 = vsel %vm299, %v292, %v296
    %v301 = vand.u32 2147483647, %v291
    %vm302 = vcmp.eq.f32.partialorder %v301, 8.507059e+37
    %v303 = vand.u32 %v291, 2147483648
    %v304 = vor.u32 1.1754944e-38, %v303
    %v305 = vsel %vm302, %v304, %v300
    %v306 = vmul.f32 %v288, %v305
    %307 = vrot.lane.b32.xlu0 %v147, 64
    %v308 = vpop.permute.xlu0 %307
    %v311 = vsel %vm257, %v306, 0
    %313 = vmatpush.msra.mxu0 0.0
    %314 = vmatpush.msra.mxu0 0.0
    %315 = vmatpush.msra.mxu0 0.0
    %316 = vmatpush.msra.mxu0 0.0
    %317 = vmatpush.msra.mxu0 0.0
    %318 = vmatpush.msra.mxu0 0.0
    %319 = vmatpush.msra.mxu0 0.0
    %320 = vmatpush.msra.mxu0 0.0
    %321 = vmatpush.msra.mxu0 0.0
    %322 = vmatpush.msra.mxu0 0.0
    %323 = vmatpush.msra.mxu0 0.0
    %324 = vmatpush.msra.mxu0 0.0
    %325 = vmatpush.msra.mxu0 0.0
    %326 = vmatpush.msra.mxu0 0.0
    %327 = vmatpush.msra.mxu0 0.0
    %328 = vmatpush.msra.mxu0 %v308
    %329 = vmatmul.f32.gmra.mxu0 %v311
    %v330 = vpop.f32.mrf.mxu0
    %v331 = vadd.f32 0.0, %v330
    %332 = vdwg.mxu0
    %v333 = vld [vmem:[#allocation5 + $0x110] sm:$0xff]
    %v334 = vadd.f32 %v306, 0.0
    %335 = vrot.lane.b32.xlu0 %v147, 120
    %v336 = vpop.permute.xlu0 %335
    %337 = vrot.lane.b32.xlu0 %v147, 88
    %v338 = vpop.permute.xlu0 %337
    %v339 = vsel %vm257, %v336, 0
    %v341 = vsel %vm257, %v338, 0
    %343 = vmatpush.xpose.msra.mxu0 0.0
    %344 = vmatpush.xpose.msra.mxu0 0.0
    %345 = vmatpush.xpose.msra.mxu0 0.0
    %346 = vmatpush.xpose.msra.mxu0 0.0
    %347 = vmatpush.xpose.msra.mxu0 0.0
    %348 = vmatpush.xpose.msra.mxu0 0.0
    %349 = vmatpush.xpose.msra.mxu0 0.0
    %350 = vmatpush.xpose.msra.mxu0 0.0
    %351 = vmatpush.xpose.msra.mxu0 0.0
    %352 = vmatpush.xpose.msra.mxu0 0.0
    %353 = vmatpush.xpose.msra.mxu0 0.0
    %354 = vmatpush.xpose.msra.mxu0 0.0
    %355 = vmatpush.xpose.msra.mxu0 0.0
    %356 = vmatpush.xpose.msra.mxu0 0.0
    %357 = vmatpush.xpose.msra.mxu0 0.0
    %358 = vmatpush.xpose.msra.mxu0 %v341
    %359 = vmatmul.f32.gmra.mxu0 %v339
    %v360 = vpop.f32.mrf.mxu0
    %v361 = vadd.f32 0.0, %v360
    %362 = vdwg.mxu0
    %v363 = vmul.f32 %v361, 0.35355338
    %v364 = vsel %vm257, %v363, -inf
    %365 = vmax.xlane.f32.xlu0 %v364
    %v366 = vpop.xlane.xlu0 %365
    %v367 = vsub.f32 %v363, %v366
    %v368 = vmul.f32 %v367, 1.442695
    %v369 = vpow.pop %v368
    %v370 = vsel %vm257, %v369, 0.0
    %371 = vadd.xlane.f32.xlu0 %v370
    %v372 = vpop.xlane.xlu0 %371
    %v373 = vrcp.pop %v372
    %v374 = vmul.f32 %v372, %v373
    %v375 = vsub.f32 1.0, %v374
    %v376 = vmul.f32 %v373, %v375
    %v377 = vadd.f32 %v373, %v376
    %vm378 = vweird.f32 %v372
    %vm379 = vweird.f32 %v373
    %vm380 = vmor %vm378, %vm379
    %v381 = vsel %vm380, %v373, %v377
    %v382 = vand.u32 2147483647, %v372
    %vm383 = vcmp.eq.f32.partialorder %v382, 8.507059e+37
    %v384 = vand.u32 %v372, 2147483648
    %v385 = vor.u32 1.1754944e-38, %v384
    %v386 = vsel %vm383, %v385, %v381
    %v387 = vmul.f32 %v369, %v386
    %388 = vrot.lane.b32.xlu0 %v147, 56
    %v389 = vpop.permute.xlu0 %388
    %v392 = vsel %vm257, %v387, 0
    %394 = vmatpush.msra.mxu0 0.0
    %395 = vmatpush.msra.mxu0 0.0
    %396 = vmatpush.msra.mxu0 0.0
    %397 = vmatpush.msra.mxu0 0.0
    %398 = vmatpush.msra.mxu0 0.0
    %399 = vmatpush.msra.mxu0 0.0
    %400 = vmatpush.msra.mxu0 0.0
    %401 = vmatpush.msra.mxu0 0.0
    %402 = vmatpush.msra.mxu0 0.0
    %403 = vmatpush.msra.mxu0 0.0
    %404 = vmatpush.msra.mxu0 0.0
    %405 = vmatpush.msra.mxu0 0.0
    %406 = vmatpush.msra.mxu0 0.0
    %407 = vmatpush.msra.mxu0 0.0
    %408 = vmatpush.msra.mxu0 0.0
    %409 = vmatpush.msra.mxu0 %v389
    %410 = vmatmul.f32.gmra.mxu0 %v392
    %v411 = vpop.f32.mrf.mxu0
    %v412 = vadd.f32 0.0, %v411
    %413 = vdwg.mxu0
    %v414 = vld [vmem:[#allocation5 + $0x118] sm:$0xff]
    %v416 = vsel %vm257, %v412, 0
    %418 = vmatpush.msra.mxu0 0.0
    %419 = vmatpush.msra.mxu0 0.0
    %420 = vmatpush.msra.mxu0 0.0
    %421 = vmatpush.msra.mxu0 0.0
    %422 = vmatpush.msra.mxu0 0.0
    %423 = vmatpush.msra.mxu0 0.0
    %424 = vmatpush.msra.mxu0 0.0
    %425 = vmatpush.msra.mxu0 0.0
    %426 = vmatpush.msra.mxu0 0.0
    %427 = vmatpush.msra.mxu0 0.0
    %428 = vmatpush.msra.mxu0 0.0
    %429 = vmatpush.msra.mxu0 0.0
    %430 = vmatpush.msra.mxu0 0.0
    %431 = vmatpush.msra.mxu0 0.0
    %432 = vmatpush.msra.mxu0 0.0
    %433 = vmatpush.msra.mxu0 %v414
    %434 = vmatmul.f32.gmra.mxu0 %v416
    %v435 = vpop.f32.mrf.mxu0
    %v436 = vadd.f32 0.0, %v435
    %437 = vdwg.mxu0
    %v439 = vsel %vm257, %v331, 0
    %441 = vmatpush.msra.mxu0 0.0
    %442 = vmatpush.msra.mxu0 0.0
    %443 = vmatpush.msra.mxu0 0.0
    %444 = vmatpush.msra.mxu0 0.0
    %445 = vmatpush.msra.mxu0 0.0
    %446 = vmatpush.msra.mxu0 0.0
    %447 = vmatpush.msra.mxu0 0.0
    %448 = vmatpush.msra.mxu0 0.0
    %449 = vmatpush.msra.mxu0 0.0
    %450 = vmatpush.msra.mxu0 0.0
    %451 = vmatpush.msra.mxu0 0.0
    %452 = vmatpush.msra.mxu0 0.0
    %453 = vmatpush.msra.mxu0 0.0
    %454 = vmatpush.msra.mxu0 0.0
    %455 = vmatpush.msra.mxu0 0.0
    %456 = vmatpush.msra.mxu0 %v333
    %457 = vmatmul.f32.gmra.mxu0 %v439
    %v458 = vpop.f32.mrf.mxu0
    %v459 = vadd.f32 %v436, %v458
    %460 = vdwg.mxu0
    %v461 = vadd.f32 %v334, %v387
    %462 = vrot.lane.b32.xlu0 %v147, 112
    %v463 = vpop.permute.xlu0 %462
    %464 = vrot.lane.b32.xlu0 %v147, 80
    %v465 = vpop.permute.xlu0 %464
    %v466 = vsel %vm257, %v463, 0
    %v468 = vsel %vm257, %v465, 0
    %470 = vmatpush.xpose.msra.mxu0 0.0
    %471 = vmatpush.xpose.msra.mxu0 0.0
    %472 = vmatpush.xpose.msra.mxu0 0.0
    %473 = vmatpush.xpose.msra.mxu0 0.0
    %474 = vmatpush.xpose.msra.mxu0 0.0
    %475 = vmatpush.xpose.msra.mxu0 0.0
    %476 = vmatpush.xpose.msra.mxu0 0.0
    %477 = vmatpush.xpose.msra.mxu0 0.0
    %478 = vmatpush.xpose.msra.mxu0 0.0
    %479 = vmatpush.xpose.msra.mxu0 0.0
    %480 = vmatpush.xpose.msra.mxu0 0.0
    %481 = vmatpush.xpose.msra.mxu0 0.0
    %482 = vmatpush.xpose.msra.mxu0 0.0
    %483 = vmatpush.xpose.msra.mxu0 0.0
    %484 = vmatpush.xpose.msra.mxu0 0.0
    %485 = vmatpush.xpose.msra.mxu0 %v468
    %486 = vmatmul.f32.gmra.mxu0 %v466
    %v487 = vpop.f32.mrf.mxu0
    %v488 = vadd.f32 0.0, %v487
    %489 = vdwg.mxu0
    %v490 = vmul.f32 %v488, 0.35355338
    %v491 = vsel %vm257, %v490, -inf
    %492 = vmax.xlane.f32.xlu0 %v491
    %v493 = vpop.xlane.xlu0 %492
    %v494 = vsub.f32 %v490, %v493
    %v495 = vmul.f32 %v494, 1.442695
    %v496 = vpow.pop %v495
    %v497 = vsel %vm257, %v496, 0.0
    %498 = vadd.xlane.f32.xlu0 %v497
    %v499 = vpop.xlane.xlu0 %498
    %v500 = vrcp.pop %v499
    %v501 = vmul.f32 %v499, %v500
    %v502 = vsub.f32 1.0, %v501
    %v503 = vmul.f32 %v500, %v502
    %v504 = vadd.f32 %v500, %v503
    %vm505 = vweird.f32 %v499
    %vm506 = vweird.f32 %v500
    %vm507 = vmor %vm505, %vm506
    %v508 = vsel %vm507, %v500, %v504
    %v509 = vand.u32 2147483647, %v499
    %vm510 = vcmp.eq.f32.partialorder %v509, 8.507059e+37
    %v511 = vand.u32 %v499, 2147483648
    %v512 = vor.u32 1.1754944e-38, %v511
    %v513 = vsel %vm510, %v512, %v508
    %v514 = vmul.f32 %v496, %v513
    %515 = vrot.lane.b32.xlu0 %v147, 48
    %v516 = vpop.permute.xlu0 %515
    %v519 = vsel %vm257, %v514, 0
    %521 = vmatpush.msra.mxu0 0.0
    %522 = vmatpush.msra.mxu0 0.0
    %523 = vmatpush.msra.mxu0 0.0
    %524 = vmatpush.msra.mxu0 0.0
    %525 = vmatpush.msra.mxu0 0.0
    %526 = vmatpush.msra.mxu0 0.0
    %527 = vmatpush.msra.mxu0 0.0
    %528 = vmatpush.msra.mxu0 0.0
    %529 = vmatpush.msra.mxu0 0.0
    %530 = vmatpush.msra.mxu0 0.0
    %531 = vmatpush.msra.mxu0 0.0
    %532 = vmatpush.msra.mxu0 0.0
    %533 = vmatpush.msra.mxu0 0.0
    %534 = vmatpush.msra.mxu0 0.0
    %535 = vmatpush.msra.mxu0 0.0
    %536 = vmatpush.msra.mxu0 %v516
    %537 = vmatmul.f32.gmra.mxu0 %v519
    %v538 = vpop.f32.mrf.mxu0
    %v539 = vadd.f32 0.0, %v538
    %540 = vdwg.mxu0
    %v541 = vld [vmem:[#allocation5 + $0x120] sm:$0xff]
    %v543 = vsel %vm257, %v539, 0
    %545 = vmatpush.msra.mxu0 0.0
    %546 = vmatpush.msra.mxu0 0.0
    %547 = vmatpush.msra.mxu0 0.0
    %548 = vmatpush.msra.mxu0 0.0
    %549 = vmatpush.msra.mxu0 0.0
    %550 = vmatpush.msra.mxu0 0.0
    %551 = vmatpush.msra.mxu0 0.0
    %552 = vmatpush.msra.mxu0 0.0
    %553 = vmatpush.msra.mxu0 0.0
    %554 = vmatpush.msra.mxu0 0.0
    %555 = vmatpush.msra.mxu0 0.0
    %556 = vmatpush.msra.mxu0 0.0
    %557 = vmatpush.msra.mxu0 0.0
    %558 = vmatpush.msra.mxu0 0.0
    %559 = vmatpush.msra.mxu0 0.0
    %560 = vmatpush.msra.mxu0 %v541
    %561 = vmatmul.f32.gmra.mxu0 %v543
    %v562 = vpop.f32.mrf.mxu0
    %v563 = vadd.f32 0.0, %v562
    %564 = vdwg.mxu0
    %v565 = vadd.f32 %v459, %v563
    %v566 = vadd.f32 %v461, %v514
    %567 = vrot.lane.b32.xlu0 %v147, 104
    %v568 = vpop.permute.xlu0 %567
    %569 = vrot.lane.b32.xlu0 %v147, 72
    %v570 = vpop.permute.xlu0 %569
    %v571 = vsel %vm257, %v568, 0
    %v573 = vsel %vm257, %v570, 0
    %575 = vmatpush.xpose.msra.mxu0 0.0
    %576 = vmatpush.xpose.msra.mxu0 0.0
    %577 = vmatpush.xpose.msra.mxu0 0.0
    %578 = vmatpush.xpose.msra.mxu0 0.0
    %579 = vmatpush.xpose.msra.mxu0 0.0
    %580 = vmatpush.xpose.msra.mxu0 0.0
    %581 = vmatpush.xpose.msra.mxu0 0.0
    %582 = vmatpush.xpose.msra.mxu0 0.0
    %583 = vmatpush.xpose.msra.mxu0 0.0
    %584 = vmatpush.xpose.msra.mxu0 0.0
    %585 = vmatpush.xpose.msra.mxu0 0.0
    %586 = vmatpush.xpose.msra.mxu0 0.0
    %587 = vmatpush.xpose.msra.mxu0 0.0
    %588 = vmatpush.xpose.msra.mxu0 0.0
    %589 = vmatpush.xpose.msra.mxu0 0.0
    %590 = vmatpush.xpose.msra.mxu0 %v573
    %591 = vmatmul.f32.gmra.mxu0 %v571
    %v592 = vpop.f32.mrf.mxu0
    %v593 = vadd.f32 0.0, %v592
    %594 = vdwg.mxu0
    %v595 = vmul.f32 %v593, 0.35355338
    %v596 = vsel %vm257, %v595, -inf
    %597 = vmax.xlane.f32.xlu0 %v596
    %v598 = vpop.xlane.xlu0 %597
    %v599 = vsub.f32 %v595, %v598
    %v600 = vmul.f32 %v599, 1.442695
    %v601 = vpow.pop %v600
    %v602 = vsel %vm257, %v601, 0.0
    %603 = vadd.xlane.f32.xlu0 %v602
    %v604 = vpop.xlane.xlu0 %603
    %v605 = vrcp.pop %v604
    %v606 = vmul.f32 %v604, %v605
    %v607 = vsub.f32 1.0, %v606
    %v608 = vmul.f32 %v605, %v607
    %v609 = vadd.f32 %v605, %v608
    %vm610 = vweird.f32 %v604
    %vm611 = vweird.f32 %v605
    %vm612 = vmor %vm610, %vm611
    %v613 = vsel %vm612, %v605, %v609
    %v614 = vand.u32 2147483647, %v604
    %vm615 = vcmp.eq.f32.partialorder %v614, 8.507059e+37
    %v616 = vand.u32 %v604, 2147483648
    %v617 = vor.u32 1.1754944e-38, %v616
    %v618 = vsel %vm615, %v617, %v613
    %v619 = vmul.f32 %v601, %v618
    %620 = vrot.lane.b32.xlu0 %v147, 40
    %v621 = vpop.permute.xlu0 %620
    %v624 = vsel %vm257, %v619, 0
    %626 = vmatpush.msra.mxu0 0.0
    %627 = vmatpush.msra.mxu0 0.0
    %628 = vmatpush.msra.mxu0 0.0
    %629 = vmatpush.msra.mxu0 0.0
    %630 = vmatpush.msra.mxu0 0.0
    %631 = vmatpush.msra.mxu0 0.0
    %632 = vmatpush.msra.mxu0 0.0
    %633 = vmatpush.msra.mxu0 0.0
    %634 = vmatpush.msra.mxu0 0.0
    %635 = vmatpush.msra.mxu0 0.0
    %636 = vmatpush.msra.mxu0 0.0
    %637 = vmatpush.msra.mxu0 0.0
    %638 = vmatpush.msra.mxu0 0.0
    %639 = vmatpush.msra.mxu0 0.0
    %640 = vmatpush.msra.mxu0 0.0
    %641 = vmatpush.msra.mxu0 %v621
    %642 = vmatmul.f32.gmra.mxu0 %v624
    %v643 = vpop.f32.mrf.mxu0
    %v644 = vadd.f32 0.0, %v643
    %645 = vdwg.mxu0
    %v646 = vld [vmem:[#allocation5 + $0x128] sm:$0xff]
    %v648 = vsel %vm257, %v644, 0
    %650 = vmatpush.msra.mxu0 0.0
    %651 = vmatpush.msra.mxu0 0.0
    %652 = vmatpush.msra.mxu0 0.0
    %653 = vmatpush.msra.mxu0 0.0
    %654 = vmatpush.msra.mxu0 0.0
    %655 = vmatpush.msra.mxu0 0.0
    %656 = vmatpush.msra.mxu0 0.0
    %657 = vmatpush.msra.mxu0 0.0
    %658 = vmatpush.msra.mxu0 0.0
    %659 = vmatpush.msra.mxu0 0.0
    %660 = vmatpush.msra.mxu0 0.0
    %661 = vmatpush.msra.mxu0 0.0
    %662 = vmatpush.msra.mxu0 0.0
    %663 = vmatpush.msra.mxu0 0.0
    %664 = vmatpush.msra.mxu0 0.0
    %665 = vmatpush.msra.mxu0 %v646
    %666 = vmatmul.f32.gmra.mxu0 %v648
    %v667 = vpop.f32.mrf.mxu0
    %v668 = vadd.f32 0.0, %v667
    %669 = vdwg.mxu0
    %v670 = vadd.f32 %v565, %v668
    %v671 = vadd.f32 %v566, %v619
    %v672 = vld [vmem:[#allocation5 + $0x148] sm:$0x1]
    %v673 = vperm.slane %v672, 0
    %v674 = vadd.f32 %v670, %v673
    %v675 = vxor.u32 %v674, 2147483648
    %v676 = vmul.f32 %v675, 1.442695
    %v677 = vpow.pop %v676
    %v678 = vadd.f32 %v677, 1.0
    %v679 = vrcp.pop %v678
    %v680 = vmul.f32 %v678, %v679
    %v681 = vsub.f32 1.0, %v680
    %v682 = vmul.f32 %v679, %v681
    %v683 = vadd.f32 %v679, %v682
    %vm684 = vweird.f32 %v678
    %vm685 = vweird.f32 %v679
    %vm686 = vmor %vm684, %vm685
    %v687 = vsel %vm686, %v679, %v683
    %v688 = vand.u32 2147483647, %v678
    %vm689 = vcmp.eq.f32.partialorder %v688, 8.507059e+37
    %v690 = vand.u32 %v678, 2147483648
    %v691 = vor.u32 1.1754944e-38, %v690
    %v692 = vsel %vm689, %v691, %v687
    %v693 = vmul.f32 1.0, %v692
    %v694 = vmul.f32 %v671, 0.25
    %695 = vrot.lane.b32.xlu0 %v147, 32
    %v696 = vpop.permute.xlu0 %695
    %699 = vrot.lane.b32.xlu0 %v167, 32
    %v700 = vpop.permute.xlu0 %699
    %703 = vrot.lane.b32.xlu0 %v217, 32
    %v704 = vpop.permute.xlu0 %703
    %707 = vrot.lane.b32.xlu0 %v236, 32
    %v708 = vpop.permute.xlu0 %707
    %711 = vrot.lane.b32.xlu0 %v254, 32
    %v712 = vpop.permute.xlu0 %711
    %715 = vrot.lane.b32.xlu0 %v693, 15
    %v716 = vpop.permute.xlu0 %715
    %719 = vrot.lane.b32.xlu0 %v694, 18
    %v720 = vpop.permute.xlu0 %719
    %vm722 = vcmask 23552
    %v723 = vsel %vm722, %v696, %v700
    %vm724 = vcmask 48128
    %v725 = vsel %vm724, %v723, %v704
    %vm726 = vcmask 72704
    %v727 = vsel %vm726, %v725, %v708
    %vm728 = vcmask 97280
    %v729 = vsel %vm728, %v727, %v712
    %vm730 = vcmask 121856
    %v731 = vsel %vm730, %v729, %v716
    %vm732 = vcmask 146432
    %v733 = vsel %vm732, %v731, %v720
    %vm734 = vcmask 211968
    %v735 = vsel %vm734, %v733, 0.0
    %736 = vst [vmem:[#allocation7] sm:$0xff] %v735
    // Predicated region
    $region18: #{tpu_custom_call.1} parent=1 // pred_check
      _
    $region19: #{tpu_custom_call.1} parent=1 // pred_check_branch
      %738 = sbr.rel (0) target = $region21
    $region20: #{tpu_custom_call.1} parent=1 // pred_region
      %740 = vsyncadd [#allocation4], 0
      %s742 = sshll.u32 [#allocation7], 4
      %s743 = int_to_ptr.vmem [resolvable:$true] %s742
      %s744 = sshll.u32 %s2, 4
      %s745 = int_to_ptr.hbm [resolvable:$true] %s744
      %747 = dma.vmem_to_hbm [thread:$0]  %s743, 128, %s745, [#allocation4]
    $region21: #{tpu_custom_call.1} parent=1 // pred_fallthru
      _
    // Predicated region
    $region22: #{tpu_custom_call.1} parent=1 // pred_check
      _
    $region23: #{tpu_custom_call.1} parent=1 // pred_check_branch
      %749 = sbr.rel (0) target = $region25
    $region24: #{tpu_custom_call.1} parent=1 // pred_region
      %751 = dma.done [#allocation4], 128
    $region25: #{tpu_custom_call.1} parent=1 // pred_fallthru
      _
    %752 = vsyncpa [#allocation3], 1
    %753 = vsyncpa [#allocation6], 1
    %754 = vsyncpa [#allocation4], 1

</llo_original>
